<compile_context>
chip_gen: v7x
topology: tpu7x:2x2x1
jax: 0.10.0
libtpu: 0.0.40
codegen_flags: <defaults>
</compile_context>

<pallas_src>
import math

import jax
import jax.numpy as jnp
from jax.experimental import pallas as pl
from jax.experimental.pallas import tpu as pltpu


def _round_up(v, m):
    return ((v + m - 1) // m) * m


def _make_kernel(gated, has_bias, activation, acc_in_out):
    """Builds the fused NonLinear kernel for a static configuration."""

    def kernel(*refs):
        idx = 0
        x_ref = refs[idx]; idx += 1
        w_ref = refs[idx]; idx += 1
        b_ref = None
        if has_bias:
            b_ref = refs[idx]; idx += 1
        gw_ref = gb_ref = None
        if gated:
            gw_ref = refs[idx]; idx += 1
            gb_ref = refs[idx]; idx += 1
        o_ref = refs[idx]; idx += 1
        if acc_in_out:
            acc_h = o_ref                    # f32 output block doubles as acc
        else:
            acc_h = refs[idx]; idx += 1
        acc_g = refs[idx] if gated else None

        k = pl.program_id(2)
        last_k = pl.num_programs(2) - 1

        # Load the x tile once; reuse it for both matmuls when gated.
        x_blk = x_ref[...]
        p_h = jnp.dot(x_blk, w_ref[...], preferred_element_type=jnp.float32)
        p_g = (jnp.dot(x_blk, gw_ref[...], preferred_element_type=jnp.float32)
               if gated else None)

        @pl.when(k == 0)
        def _init():                         # first step: plain store, no RMW
            acc_h[...] = p_h.astype(acc_h.dtype)
            if gated:
                acc_g[...] = p_g

        @pl.when(k > 0)
        def _accum():
            acc_h[...] += p_h.astype(acc_h.dtype)
            if gated:
                acc_g[...] += p_g

        need_epilogue = has_bias or gated or (activation is not None) or (not acc_in_out)
        if need_epilogue:
            @pl.when(k == last_k)
            def _finish():
                h = acc_h[...].astype(jnp.float32)
                if has_bias:
                    h = h + b_ref[...].astype(jnp.float32)
                if gated:
                    g = acc_g[...] + gb_ref[...].astype(jnp.float32)
                    h = h * jax.nn.sigmoid(g)
                elif activation is not None:
                    h = activation(h)
                o_ref[...] = h.astype(o_ref.dtype)

    return kernel


def nonlinear(x, weight, bias=None, gate_weight=None, gate_bias=None,
              activation=None, *, compute_dtype=None,
              tm=256, tn=512, tk=512, weight_buffers=2):
    """Fused NonLinear forward.

    x:           (..., K)
    weight:      (K, N)  -- PRE-TRANSPOSED (input_size, output_size).
                 Transpose the PyTorch (N, K) nn.Linear weight ONCE at init.
    bias:        (N,) or None
    gate_weight: (K, N) or None  (gated=True iff provided)
    gate_bias:   (N,) or None    (zeros if None while gated)
    activation:  JAX-traceable elementwise fn (used only when not gated)
    compute_dtype: optional matmul input dtype (e.g. jnp.bfloat16); f32 acc.
    """
    orig_shape = x.shape
    K = orig_shape[-1]
    M = int(math.prod(orig_shape[:-1]))
    out_dtype = x.dtype

    x2 = x.reshape(M, K)
    Kw, N = weight.shape
    assert Kw == K, (weight.shape, K)

    gated = gate_weight is not None
    has_bias = bias is not None

    if compute_dtype is not None:
        x2 = x2.astype(compute_dtype)
        weight = weight.astype(compute_dtype)
        if gated:
            gate_weight = gate_weight.astype(compute_dtype)

    itemsize = jnp.dtype(x2.dtype).itemsize
    base_m = max(8, 32 // itemsize)   # sublane granularity: f32->8, bf16->16, 8bit->32

    # Cap tiles (don't exceed the padded problem size), keep lane dims 128-mult.
    tm_ = min(_round_up(tm, base_m), _round_up(M, base_m))
    tn_ = min(_round_up(tn, 128), _round_up(N, 128))
    tk_ = min(_round_up(tk, 128), _round_up(K, 128))

    Mp, Np, Kp = _round_up(M, tm_), _round_up(N, tn_), _round_up(K, tk_)

    # Zero-pad to tile multiples: exact for the K reduction; padded M/N rows /
    # cols are sliced off after the kernel. No-ops for already-aligned shapes.
    if (Mp, Kp) != (M, K):
        x2 = jnp.pad(x2, ((0, Mp - M), (0, Kp - K)))
    if (Kp, Np) != (K, N):
        weight = jnp.pad(weight, ((0, Kp - K), (0, Np - N)))
        if gated:
            gate_weight = jnp.pad(gate_weight, ((0, Kp - K), (0, Np - N)))

    if has_bias:
        b2 = bias.reshape(1, N)
        if Np != N:
            b2 = jnp.pad(b2, ((0, 0), (0, Np - N)))
    if gated:
        gb = gate_bias if gate_bias is not None else jnp.zeros((N,), jnp.float32)
        gb2 = gb.reshape(1, N)
        if Np != N:
            gb2 = jnp.pad(gb2, ((0, 0), (0, Np - N)))

    grid_m, grid_n, grid_k = Mp // tm_, Np // tn_, Kp // tk_

    # v7x megacore axis choice: if the weight stream dominates (gated / small
    # batch), put N first so each TensorCore reads disjoint weight columns.
    weight_bytes = Kp * Np * itemsize * (2 if gated else 1)
    x_bytes = Mp * Kp * itemsize
    shard_n_first = grid_n >= 2 and (weight_bytes >= x_bytes or grid_m < 2)

    if shard_n_first:
        grid = (grid_n, grid_m, grid_k)
        x_map = lambda j, i, k: (i, k)
        w_map = lambda j, i, k: (k, j)
        b_map = lambda j, i, k: (0, j)
        o_map = lambda j, i, k: (i, j)
    else:
        grid = (grid_m, grid_n, grid_k)
        x_map = lambda i, j, k: (i, k)
        w_map = lambda i, j, k: (k, j)
        b_map = lambda i, j, k: (0, j)
        o_map = lambda i, j, k: (i, j)

    def wspec(map_fn):
        if weight_buffers != 2:               # deeper weight pipelining (v5e)
            return pl.BlockSpec((tk_, tn_), map_fn,
                                pipeline_mode=pl.Buffered(weight_buffers))
        return pl.BlockSpec((tk_, tn_), map_fn)

    inputs = [x2, weight]
    in_specs = [pl.BlockSpec((tm_, tk_), x_map), wspec(w_map)]
    if has_bias:
        inputs.append(b2)
        in_specs.append(pl.BlockSpec((1, tn_), b_map))
    if gated:
        inputs.append(gate_weight)
        in_specs.append(wspec(w_map))
        inputs.append(gb2)
        in_specs.append(pl.BlockSpec((1, tn_), b_map))

    # f32 output -> accumulate directly in the resident output block.
    acc_in_out = jnp.dtype(out_dtype) == jnp.dtype(jnp.float32)
    scratch_shapes = []
    if not acc_in_out:
        scratch_shapes.append(pltpu.VMEM((tm_, tn_), jnp.float32))
    if gated:
        scratch_shapes.append(pltpu.VMEM((tm_, tn_), jnp.float32))

    kernel = _make_kernel(gated, has_bias, activation, acc_in_out)

    out = pl.pallas_call(
        kernel,
        out_shape=jax.ShapeDtypeStruct((Mp, Np), out_dtype),
        grid_spec=pltpu.PrefetchScalarGridSpec(
            num_scalar_prefetch=0,
            grid=grid,
            in_specs=in_specs,
            out_specs=pl.BlockSpec((tm_, tn_), o_map),
            scratch_shapes=scratch_shapes,
        ),
        compiler_params=pltpu.CompilerParams(
            dimension_semantics=("parallel", "parallel", "arbitrary"),
            vmem_limit_bytes=48 * 1024 * 1024,
        ),
    )(*inputs)

    out = out[:M, :N]
    return out.reshape(orig_shape[:-1] + (N,))


def _reference(x, w_kn, b=None, gw_kn=None, gb=None, activation=None,
               compute_dtype=None):
    if compute_dtype is not None:
        xc = x.astype(compute_dtype).astype(jnp.float32)
        wc = w_kn.astype(compute_dtype).astype(jnp.float32)
        gwc = (gw_kn.astype(compute_dtype).astype(jnp.float32)
               if gw_kn is not None else None)
    else:
        xc, wc, gwc = x, w_kn, gw_kn
    h = xc @ wc
    if b is not None:
        h = h + b
    if gwc is not None:
        g = jax.nn.sigmoid(xc @ gwc + (gb if gb is not None else 0.0))
        h = h * g
    elif activation is not None:
        h = activation(h)
    return h.astype(x.dtype)


if __name__ == "__main__":
    key = jax.random.PRNGKey(0)
    keys = jax.random.split(key, 8)

    # NonLinear(input_size=32, output_size=32) — small shapes.
    batch, input_size, output_size = 8, 32, 32
    x = jax.random.normal(keys[0], (batch, input_size), jnp.float32)
    # PyTorch nn.Linear stores weight as (out, in); convert layout ONCE at
    # parameter-init time (not per forward call).
    w_oi = jax.random.normal(keys[1], (output_size, input_size), jnp.float32) * 0.1
    b = jax.random.normal(keys[2], (output_size,), jnp.float32) * 0.1
    gw_oi = jax.random.normal(keys[3], (output_size, input_size), jnp.float32) * 0.1
    gb = jax.random.normal(keys[4], (output_size,), jnp.float32) * 0.1
    w_kn, gw_kn = w_oi.T, gw_oi.T

    # 1) Default config: bias=False, gated=False, activation=None -> plain linear.
    out_plain = nonlinear(x, w_kn)
    # 2) Activation path: NonLinear(..., activation=tanh).
    out_act = nonlinear(x, w_kn, activation=jnp.tanh)
    # 3) Gated path: NonLinear(..., bias=True, gated=True).
    out_gated = nonlinear(x, w_kn, bias=b, gate_weight=gw_kn, gate_bias=gb)

    # 4) Multi-step K reduction (grid_k > 1), gated, f32.
    M2, K2, N2 = 16, 256, 128
    x2 = jax.random.normal(keys[5], (M2, K2), jnp.float32)
    w2 = jax.random.normal(keys[6], (K2, N2), jnp.float32) * 0.05
    gw2 = jax.random.normal(keys[7], (K2, N2), jnp.float32) * 0.05
    out_multi = nonlinear(x2, w2, gate_weight=gw2, tk=128)

    # 5) bf16 MXU input path (f32 accumulation / output), activation=relu.
    out_bf16 = nonlinear(x2, w2, activation=jax.nn.relu,
                         compute_dtype=jnp.bfloat16)

    jax.block_until_ready((out_plain, out_act, out_gated, out_multi, out_bf16))

    ref_plain = _reference(x, w_kn)
    ref_act = _reference(x, w_kn, activation=jnp.tanh)
    ref_gated = _reference(x, w_kn, b=b, gw_kn=gw_kn, gb=gb)
    ref_multi = _reference(x2, w2, gw_kn=gw2)
    ref_bf16 = _reference(x2, w2, activation=jax.nn.relu,
                          compute_dtype=jnp.bfloat16)

    assert out_plain.shape == (batch, output_size), out_plain.shape
    assert jnp.allclose(out_plain, ref_plain, atol=1e-4, rtol=1e-4), "plain mismatch"
    assert jnp.allclose(out_act, ref_act, atol=1e-4, rtol=1e-4), "activation mismatch"
    assert jnp.allclose(out_gated, ref_gated, atol=1e-4, rtol=1e-4), "gated mismatch"
    assert jnp.allclose(out_multi, ref_multi, atol=1e-3, rtol=1e-3), "multi-k mismatch"
    assert jnp.allclose(out_bf16, ref_bf16, atol=3e-2, rtol=3e-2), "bf16 mismatch"

    print("KERNEL_OK")
</pallas_src>

<mosaic_0001>
module attributes {stable_mosaic.version = 11 : i64} {
  func.func @kernel(%arg0: i32, %arg1: i32, %arg2: i32, %arg3: memref<8x128xf32, #tpu.memory_space<vmem>>, %arg4: memref<128x128xf32, #tpu.memory_space<vmem>>, %arg5: memref<8x128xf32, #tpu.memory_space<vmem>>) attributes {dimension_semantics = [#tpu.dimension_semantics<parallel>, #tpu.dimension_semantics<parallel>, #tpu.dimension_semantics<arbitrary>], iteration_bounds = array<i64: 1, 1, 1>, scalar_prefetch = 0 : i64, scratch_operands = 0 : i64, tpu.core_type = #tpu.core_type<tc>, window_params = [{transform_indices = @transform_0, window_bounds = array<i64: 8, 128>}, {transform_indices = @transform_1, window_bounds = array<i64: 128, 128>}, {transform_indices = @transform_2, window_bounds = array<i64: 8, 128>}]} {
    %c0 = arith.constant 0 : index
    %c0_0 = arith.constant 0 : index
    %0 = vector.load %arg3[%c0, %c0_0] : memref<8x128xf32, #tpu.memory_space<vmem>>, vector<8x128xf32>
    %c0_1 = arith.constant 0 : index
    %c0_2 = arith.constant 0 : index
    %1 = vector.load %arg4[%c0_1, %c0_2] : memref<128x128xf32, #tpu.memory_space<vmem>>, vector<128x128xf32>
    %cst = arith.constant dense<0.000000e+00> : vector<8x128xf32>
    %2 = tpu.matmul %0, %1, %cst {dimension_numbers = #tpu.dot_dimension_numbers<[1], [0], [0], [1], [0, 0, 1, 1], [], []>} : vector<8x128xf32>, vector<128x128xf32>, vector<8x128xf32> -> vector<8x128xf32>
    %c0_i32 = arith.constant 0 : i32
    %3 = arith.cmpi eq, %arg2, %c0_i32 : i32
    %4 = arith.extui %3 : i1 to i32
    %c0_i32_3 = arith.constant 0 : i32
    %5 = arith.cmpi ne, %4, %c0_i32_3 : i32
    scf.if %5 {
      %c0_6 = arith.constant 0 : index
      %c0_7 = arith.constant 0 : index
      %9 = vector.load %arg5[%c0_6, %c0_7] : memref<8x128xf32, #tpu.memory_space<vmem>>, vector<8x128xf32>
      tpu.vector_store %arg5[%c0_6, %c0_7], %2 {strides = array<i32>} : memref<8x128xf32, #tpu.memory_space<vmem>>, vector<8x128xf32>,
    } else {
    }
    %c0_i32_4 = arith.constant 0 : i32
    %6 = arith.cmpi sgt, %arg2, %c0_i32_4 : i32
    %7 = arith.extui %6 : i1 to i32
    %c0_i32_5 = arith.constant 0 : i32
    %8 = arith.cmpi ne, %7, %c0_i32_5 : i32
    scf.if %8 {
      %c0_6 = arith.constant 0 : index
      %c0_7 = arith.constant 0 : index
      %9 = vector.load %arg5[%c0_6, %c0_7] : memref<8x128xf32, #tpu.memory_space<vmem>>, vector<8x128xf32>
      %10 = arith.addf %9, %2 : vector<8x128xf32>
      %c0_8 = arith.constant 0 : index
      %c0_9 = arith.constant 0 : index
      %11 = vector.load %arg5[%c0_8, %c0_9] : memref<8x128xf32, #tpu.memory_space<vmem>>, vector<8x128xf32>
      tpu.vector_store %arg5[%c0_8, %c0_9], %10 {strides = array<i32>} : memref<8x128xf32, #tpu.memory_space<vmem>>, vector<8x128xf32>,
    } else {
    }
    return
  }
  func.func @transform_0(%arg0: i32, %arg1: i32, %arg2: i32) -> (i32, i32) {
    %c0_i32 = arith.constant 0 : i32
    return %arg0, %arg2 : i32, i32
  }
  func.func @transform_1(%arg0: i32, %arg1: i32, %arg2: i32) -> (i32, i32) {
    %c0_i32 = arith.constant 0 : i32
    return %arg2, %arg1 : i32, i32
  }
  func.func @transform_2(%arg0: i32, %arg1: i32, %arg2: i32) -> (i32, i32) {
    %c0_i32 = arith.constant 0 : i32
    return %arg0, %arg1 : i32, i32
  }
}

</mosaic_0001>

<llo_original>
// kernel: tpu_custom_call.1
$region0: #{tpu_custom_call.1}
  #allocation0 [shape = 'u32[]', space=smem, size = 0x4, offset = 0x4, fixed_abs, tag = 'smem constant byte address 0x4 - core index']
  #allocation1 [shape = 'u32[144,128]{1,0:T(1,128)}', space=vmem, size = 0x12000, scoped, tag = 'internal scratch']
  %s0 = inlined_call_operand.hbm [shape: f32[8,128], index: 0, kind: input, shape index: {}]
  %s1 = inlined_call_operand.hbm [shape: f32[128,128], index: 1, kind: input, shape index: {}]
  %s2 = inlined_call_operand.hbm [shape: f32[8,128], index: 2, kind: output, shape index: {}]
  %s3 = sld [smem:[#allocation0]]
  $region34: #{tpu_custom_call.1} parent=0
    _
  %s5 = ssub.s32 1, %s3
  %s6 = scalar_select 0, %s5, %s3
  $region1: #{tpu_custom_call.1} parent=0
    #allocation2 [shape = 'u8[4096]{0}', space=vmem, size = 0x1000, scoped, tag = 'input window, operand 0, single buffered']
    #allocation3 [shape = 's32[1]{0}', space=sflag, size = 0x4, scoped, tag = 'scoped memory for tpu_custom_call.1']
    #allocation4 [shape = 's32[1]{0}', space=sflag, size = 0x4, scoped, tag = 'scoped memory for tpu_custom_call.1']
    #allocation5 [shape = 'u8[65536]{0}', space=vmem, size = 0x10000, scoped, tag = 'input window, operand 1, single buffered']
    #allocation6 [shape = 's32[1]{0}', space=sflag, size = 0x4, scoped, tag = 'scoped memory for tpu_custom_call.1']
    #allocation7 [shape = 'u8[4096]{0}', space=vmem, size = 0x1000, scoped, tag = 'output window, operand 0, single buffered']
    %7 = vsyncpa [#allocation3], 0
    %8 = vsyncpa [#allocation6], 0
    %9 = vsyncpa [#allocation4], 0
    // Predicated region
    $region2: #{tpu_custom_call.1} parent=1 // pred_check
      _
    $region3: #{tpu_custom_call.1} parent=1 // pred_check_branch
      %11 = sbr.rel (0) target = $region5
    $region4: #{tpu_custom_call.1} parent=1 // pred_region
      %s13 = ssub.s32 128, 128
      %14 = vsyncadd [#allocation3], %s13
      %s16 = sshll.u32 [#allocation2], 4
      %s17 = int_to_ptr.vmem [resolvable:$true] %s16
      %19 = dma.hbm_to_vmem [thread:$0]  %s0, 128, %s17, [#allocation3]
    $region5: #{tpu_custom_call.1} parent=1 // pred_fallthru
      _
    // Predicated region
    $region6: #{tpu_custom_call.1} parent=1 // pred_check
      _
    $region7: #{tpu_custom_call.1} parent=1 // pred_check_branch
      %21 = sbr.rel (0) target = $region9
    $region8: #{tpu_custom_call.1} parent=1 // pred_region
      %s23 = ssub.s32 2048, 2048
      %24 = vsyncadd [#allocation6], %s23
      %s25 = sshll.u32 [#allocation5], 4
      %s26 = int_to_ptr.vmem [resolvable:$true] %s25
      %31 = dma.hbm_to_vmem [thread:$0]  %s1, 2048, %s26, [#allocation6], 128, 128, 8
    $region9: #{tpu_custom_call.1} parent=1 // pred_fallthru
      _
    // Predicated region
    $region10: #{tpu_custom_call.1} parent=1 // pred_check
      _
    $region11: #{tpu_custom_call.1} parent=1 // pred_check_branch
      %33 = sbr.rel (0) target = $region13
    $region12: #{tpu_custom_call.1} parent=1 // pred_region
      %34 = dma.done [#allocation3], 128
    $region13: #{tpu_custom_call.1} parent=1 // pred_fallthru
      _
    // Predicated region
    $region14: #{tpu_custom_call.1} parent=1 // pred_check
      _
    $region15: #{tpu_custom_call.1} parent=1 // pred_check_branch
      %36 = sbr.rel (0) target = $region17
    $region16: #{tpu_custom_call.1} parent=1 // pred_region
      %37 = dma.done [#allocation6], 2048
    $region17: #{tpu_custom_call.1} parent=1 // pred_fallthru
      _
    %v38 = vld [vmem:[#allocation2] sm:$0xff]
    %v39 = vld [vmem:[#allocation5] sm:$0xff]
    %v40 = vld [vmem:[#allocation5 + $0x8] sm:$0xff]
    %v41 = vld [vmem:[#allocation5 + $0x10] sm:$0xff]
    %v42 = vld [vmem:[#allocation5 + $0x18] sm:$0xff]
    %v43 = vld [vmem:[#allocation5 + $0x20] sm:$0xff]
    %v44 = vld [vmem:[#allocation5 + $0x28] sm:$0xff]
    %v45 = vld [vmem:[#allocation5 + $0x30] sm:$0xff]
    %v46 = vld [vmem:[#allocation5 + $0x38] sm:$0xff]
    %v47 = vld [vmem:[#allocation5 + $0x40] sm:$0xff]
    %v48 = vld [vmem:[#allocation5 + $0x48] sm:$0xff]
    %v49 = vld [vmem:[#allocation5 + $0x50] sm:$0xff]
    %v50 = vld [vmem:[#allocation5 + $0x58] sm:$0xff]
    %v51 = vld [vmem:[#allocation5 + $0x60] sm:$0xff]
    %v52 = vld [vmem:[#allocation5 + $0x68] sm:$0xff]
    %v53 = vld [vmem:[#allocation5 + $0x70] sm:$0xff]
    %v54 = vld [vmem:[#allocation5 + $0x78] sm:$0xff]
    %55 = vmatprep.subr.mxu0 0.0
    %56 = vmatpush1.msra.mxu0 %v39
    %57 = vmatprep.subr.mxu0 0.0
    %58 = vmatpush1.msra.mxu0 %v40
    %59 = vmatprep.subr.mxu0 0.0
    %60 = vmatpush1.msra.mxu0 %v41
    %61 = vmatprep.subr.mxu0 0.0
    %62 = vmatpush1.msra.mxu0 %v42
    %63 = vmatprep.subr.mxu0 0.0
    %64 = vmatpush1.msra.mxu0 %v43
    %65 = vmatprep.subr.mxu0 0.0
    %66 = vmatpush1.msra.mxu0 %v44
    %67 = vmatprep.subr.mxu0 0.0
    %68 = vmatpush1.msra.mxu0 %v45
    %69 = vmatprep.subr.mxu0 0.0
    %70 = vmatpush1.msra.mxu0 %v46
    %71 = vmatprep.subr.mxu0 0.0
    %72 = vmatpush1.msra.mxu0 %v47
    %73 = vmatprep.subr.mxu0 0.0
    %74 = vmatpush1.msra.mxu0 %v48
    %75 = vmatprep.subr.mxu0 0.0
    %76 = vmatpush1.msra.mxu0 %v49
    %77 = vmatprep.subr.mxu0 0.0
    %78 = vmatpush1.msra.mxu0 %v50
    %79 = vmatprep.subr.mxu0 0.0
    %80 = vmatpush1.msra.mxu0 %v51
    %81 = vmatprep.subr.mxu0 0.0
    %82 = vmatpush1.msra.mxu0 %v52
    %83 = vmatprep.subr.mxu0 0.0
    %84 = vmatpush1.msra.mxu0 %v53
    %85 = vmatprep.subr.mxu0 0.0
    %86 = vmatpush1.msra.mxu0 %v54
    %87 = vmatprep.subr.mxu0 0.0
    %88 = vmatpush1.msra.mxu0 0.0
    %89 = vmatprep.subr.mxu0 0.0
    %90 = vmatpush1.msra.mxu0 0.0
    %91 = vmatprep.subr.mxu0 0.0
    %92 = vmatpush1.msra.mxu0 0.0
    %93 = vmatprep.subr.mxu0 0.0
    %94 = vmatpush1.msra.mxu0 0.0
    %95 = vmatprep.subr.mxu0 0.0
    %96 = vmatpush1.msra.mxu0 0.0
    %97 = vmatprep.subr.mxu0 0.0
    %98 = vmatpush1.msra.mxu0 0.0
    %99 = vmatprep.subr.mxu0 0.0
    %100 = vmatpush1.msra.mxu0 0.0
    %101 = vmatprep.subr.mxu0 0.0
    %102 = vmatpush1.msra.mxu0 0.0
    %103 = vmatprep.subr.mxu0 0.0
    %104 = vmatpush1.msra.mxu0 0.0
    %105 = vmatprep.subr.mxu0 0.0
    %106 = vmatpush1.msra.mxu0 0.0
    %107 = vmatprep.subr.mxu0 0.0
    %108 = vmatpush1.msra.mxu0 0.0
    %109 = vmatprep.subr.mxu0 0.0
    %110 = vmatpush1.msra.mxu0 0.0
    %111 = vmatprep.subr.mxu0 0.0
    %112 = vmatpush1.msra.mxu0 0.0
    %113 = vmatprep.subr.mxu0 0.0
    %114 = vmatpush1.msra.mxu0 0.0
    %115 = vmatprep.subr.mxu0 0.0
    %116 = vmatpush1.msra.mxu0 0.0
    %117 = vmatprep.subr.mxu0 0.0
    %118 = vmatpush1.msra.mxu0 0.0
    %119 = vmatprep.mubr.f32.mxu0 0.0
    %120 = vmatmul.mubr.f32.gmra.mrb[0].mxu0 %v38
    %v121 = vpop.f32.mrb[0].mxu0
    %v122 = vadd.f32 0.0, %v121
    %v123 = vpop.f32.mrb[0].mxu0
    %124 = vdwg.mxu0
    %p125 = scmp.eq.s32.totalorder 0, 0
    // Predicated region
    $region18: #{tpu_custom_call.1} parent=1 // pred_check
      %p126 = pneg %p125
    $region19: #{tpu_custom_call.1} parent=1 // pred_check_branch
      %128 = sbr.rel (%p126) target = $region21
    $region20: #{tpu_custom_call.1} parent=1 // pred_region
      %129 = vst [vmem:[#allocation7] sm:$0xff] %v122
    $region21: #{tpu_custom_call.1} parent=1 // pred_fallthru
      _
    %p130 = scmp.gt.s32.totalorder 0, 0
    // Predicated region
    $region22: #{tpu_custom_call.1} parent=1 // pred_check
      %p131 = pneg %p130
    $region23: #{tpu_custom_call.1} parent=1 // pred_check_branch
      %133 = sbr.rel (%p131) target = $region25
    $region24: #{tpu_custom_call.1} parent=1 // pred_region
      %v134 = vld [vmem:[#allocation7] sm:$0xff]
      %v135 = vadd.f32 %v134, %v122
      %136 = vst [vmem:[#allocation7] sm:$0xff] %v135
    $region25: #{tpu_custom_call.1} parent=1 // pred_fallthru
      _
    // Predicated region
    $region26: #{tpu_custom_call.1} parent=1 // pred_check
      _
    $region27: #{tpu_custom_call.1} parent=1 // pred_check_branch
      %138 = sbr.rel (0) target = $region29
    $region28: #{tpu_custom_call.1} parent=1 // pred_region
      %s140 = ssub.s32 128, 128
      %141 = vsyncadd [#allocation4], %s140
      %s143 = sshll.u32 [#allocation7], 4
      %s144 = int_to_ptr.vmem [resolvable:$true] %s143
      %146 = dma.vmem_to_hbm [thread:$0]  %s144, 128, %s2, [#allocation4]
    $region29: #{tpu_custom_call.1} parent=1 // pred_fallthru
      _
    // Predicated region
    $region30: #{tpu_custom_call.1} parent=1 // pred_check
      _
    $region31: #{tpu_custom_call.1} parent=1 // pred_check_branch
      %148 = sbr.rel (0) target = $region33
    $region32: #{tpu_custom_call.1} parent=1 // pred_region
      %149 = dma.done [#allocation4], 128
    $region33: #{tpu_custom_call.1} parent=1 // pred_fallthru
      _
    %150 = vsyncpa [#allocation3], 1
    %151 = vsyncpa [#allocation6], 1
    %152 = vsyncpa [#allocation4], 1

</llo_original>
